<compile_context>
chip_gen: v7x
topology: tpu7x:2x2x1
jax: 0.10.0
libtpu: 0.0.40
codegen_flags: <defaults>
</compile_context>

<pallas_src>
import jax
import jax.numpy as jnp
from jax.experimental import pallas as pl
from jax.experimental.pallas import tpu as pltpu


def _resample_disp_kernel(mean_ref, logvar_ref, eps_ref, disp_ref):
    # All refs are (1, dim_z) VMEM tiles; pure VPU/EUP elementwise work.
    mean = mean_ref[...]
    logvar = logvar_ref[...]
    eps = eps_ref[...]
    logdisp = mean + eps * jnp.exp(0.5 * logvar)
    disp_ref[...] = jnp.exp(logdisp)


def resample_disp(logdisp_mean, logdisp_logvar, eps):
    """Pallas equivalent of LatentDispersionWithLogNormalPrior.resample_params.

    logdisp_mean, logdisp_logvar, eps: (1, dim_z) float32
    returns disp: (1, dim_z) float32
    """
    dim_z = logdisp_mean.shape[1]
    vmem = pl.BlockSpec(memory_space=pltpu.MemorySpace.VMEM)
    return pl.pallas_call(
        _resample_disp_kernel,
        out_shape=jax.ShapeDtypeStruct((1, dim_z), logdisp_mean.dtype),
        in_specs=[vmem, vmem, vmem],
        out_specs=vmem,
    )(logdisp_mean, logdisp_logvar, eps)


def latent_dispersion_forward(mu, z, disp):
    """forward(mu, z) -> disp.expand(B, dim_z).

    The batch broadcast is intentionally OUTSIDE the Pallas kernel (lazy and
    fusable by XLA) per the performance review.  mu is unused in the forward
    math, exactly like the PyTorch module.
    """
    del mu
    batch = z.shape[0]
    return jnp.broadcast_to(disp, (batch, disp.shape[1]))


if __name__ == "__main__":
    # Small shapes consistent with the module's config (dim_mu, dim_z).
    dim_mu = 16
    dim_z = 32
    batch = 2

    key = jax.random.PRNGKey(0)
    k_mu, k_z, k_eps = jax.random.split(key, 3)

    mu = jax.random.normal(k_mu, (batch, dim_mu), dtype=jnp.float32)
    z = jax.random.normal(k_z, (batch, dim_z), dtype=jnp.float32)

    # Parameters as in __init__ (prior mean = -6.0, prior logvar = 0.0).
    logdisp_mean = jnp.full((1, dim_z), -6.0, dtype=jnp.float32)
    logdisp_logvar = jnp.zeros((1, dim_z), dtype=jnp.float32)
    # Std-normal draw used by resample_params (torch.randn_like equivalent).
    eps = jax.random.normal(k_eps, (1, dim_z), dtype=jnp.float32)

    # resample_params() via the Pallas kernel, then forward().
    disp = resample_disp(logdisp_mean, logdisp_logvar, eps)
    dz = latent_dispersion_forward(mu, z, disp)
    dz = jax.block_until_ready(dz)

    # Pure-JAX reference of the same math.
    disp_ref = jnp.exp(logdisp_mean + eps * jnp.exp(0.5 * logdisp_logvar))
    dz_ref = jnp.broadcast_to(disp_ref, (batch, dim_z))

    assert dz.shape == (batch, dim_z), dz.shape
    assert jnp.allclose(dz, dz_ref, atol=1e-6, rtol=1e-6)

    print("KERNEL_OK")
</pallas_src>

<mosaic_0001>
module attributes {stable_mosaic.version = 11 : i64} {
  func.func @_resample_disp_kernel(%arg0: memref<1x32xf32, #tpu.memory_space<vmem>>, %arg1: memref<1x32xf32, #tpu.memory_space<vmem>>, %arg2: memref<1x32xf32, #tpu.memory_space<vmem>>, %arg3: memref<1x32xf32, #tpu.memory_space<vmem>>) attributes {dimension_semantics = [], scalar_prefetch = 0 : i64, scratch_operands = 0 : i64, tpu.core_type = #tpu.core_type<tc>} {
    %c0 = arith.constant 0 : index
    %c0_0 = arith.constant 0 : index
    %0 = vector.load %arg0[%c0, %c0_0] : memref<1x32xf32, #tpu.memory_space<vmem>>, vector<1x32xf32>
    %c0_1 = arith.constant 0 : index
    %c0_2 = arith.constant 0 : index
    %1 = vector.load %arg1[%c0_1, %c0_2] : memref<1x32xf32, #tpu.memory_space<vmem>>, vector<1x32xf32>
    %c0_3 = arith.constant 0 : index
    %c0_4 = arith.constant 0 : index
    %2 = vector.load %arg2[%c0_3, %c0_4] : memref<1x32xf32, #tpu.memory_space<vmem>>, vector<1x32xf32>
    %cst = arith.constant 5.000000e-01 : f32
    %3 = vector.broadcast %cst : f32 to vector<1x32xf32>
    %4 = arith.mulf %3, %1 : vector<1x32xf32>
    %5 = math.exp %4 : vector<1x32xf32>
    %6 = arith.mulf %2, %5 : vector<1x32xf32>
    %7 = arith.addf %0, %6 : vector<1x32xf32>
    %8 = math.exp %7 : vector<1x32xf32>
    %c0_5 = arith.constant 0 : index
    %c0_6 = arith.constant 0 : index
    %9 = vector.load %arg3[%c0_5, %c0_6] : memref<1x32xf32, #tpu.memory_space<vmem>>, vector<1x32xf32>
    tpu.vector_store %arg3[%c0_5, %c0_6], %8 {strides = array<i32>} : memref<1x32xf32, #tpu.memory_space<vmem>>, vector<1x32xf32>,
    return
  }
}

</mosaic_0001>

<llo_original>
// kernel: tpu_custom_call.1
$region0: #{tpu_custom_call.1}
  #allocation0 [shape = 'u32[]', space=smem, size = 0x4, offset = 0x4, fixed_abs, tag = 'smem constant byte address 0x4 - core index']
  #allocation1 [shape = 'u32[144,128]{1,0:T(1,128)}', space=vmem, size = 0x12000, scoped, tag = 'internal scratch']
  %s0 = inlined_call_operand.hbm [shape: f32[1,32], index: 0, kind: input, shape index: {}]
  %s1 = inlined_call_operand.vmem [shape: f32[1,32], index: 1, kind: input, shape index: {}]
  %s2 = inlined_call_operand.vmem [shape: f32[1,32], index: 2, kind: input, shape index: {}]
  %s3 = inlined_call_operand.hbm [shape: f32[1,32], index: 3, kind: output, shape index: {}]
  %s4 = sld [smem:[#allocation0]]
  $region26: #{tpu_custom_call.1} parent=0
    _
  %s6 = ssub.s32 1, %s4
  %s7 = scalar_select 0, %s6, %s4
  $region1: #{tpu_custom_call.1} parent=0
    #allocation2 [shape = 'u8[512]{0}', space=vmem, size = 0x400, scoped, tag = 'input window, operand 0, single buffered']
    #allocation3 [shape = 's32[1]{0}', space=sflag, size = 0x4, scoped, tag = 'scoped memory for tpu_custom_call.1']
    #allocation4 [shape = 's32[1]{0}', space=sflag, size = 0x4, scoped, tag = 'scoped memory for tpu_custom_call.1']
    #allocation5 [shape = 'u8[512]{0}', space=vmem, size = 0x400, scoped, tag = 'output window, operand 0, single buffered']
    %8 = vsyncpa [#allocation3], 0
    %9 = vsyncpa [#allocation4], 0
    // Predicated region
    $region2: #{tpu_custom_call.1} parent=1 // pred_check
      _
    $region3: #{tpu_custom_call.1} parent=1 // pred_check_branch
      %11 = sbr.rel (0) target = $region5
    $region4: #{tpu_custom_call.1} parent=1 // pred_region
      %s13 = ssub.s32 16, 16
      %14 = vsyncadd [#allocation3], %s13
      %s16 = sshll.u32 [#allocation2], 4
      %s17 = int_to_ptr.vmem [resolvable:$true] %s16
      %19 = dma.hbm_to_vmem [thread:$0]  %s0, 16, %s17, [#allocation3]
    $region5: #{tpu_custom_call.1} parent=1 // pred_fallthru
      _
    // Predicated region
    $region6: #{tpu_custom_call.1} parent=1 // pred_check
      _
    $region7: #{tpu_custom_call.1} parent=1 // pred_check_branch
      %21 = sbr.rel (0) target = $region9
    $region8: #{tpu_custom_call.1} parent=1 // pred_region
      _
    $region9: #{tpu_custom_call.1} parent=1 // pred_fallthru
      _
    // Predicated region
    $region10: #{tpu_custom_call.1} parent=1 // pred_check
      _
    $region11: #{tpu_custom_call.1} parent=1 // pred_check_branch
      %23 = sbr.rel (0) target = $region13
    $region12: #{tpu_custom_call.1} parent=1 // pred_region
      _
    $region13: #{tpu_custom_call.1} parent=1 // pred_fallthru
      _
    // Predicated region
    $region14: #{tpu_custom_call.1} parent=1 // pred_check
      _
    $region15: #{tpu_custom_call.1} parent=1 // pred_check_branch
      %25 = sbr.rel (0) target = $region17
    $region16: #{tpu_custom_call.1} parent=1 // pred_region
      %26 = dma.done [#allocation3], 16
    $region17: #{tpu_custom_call.1} parent=1 // pred_fallthru
      _
    %v27 = vld [vmem:[#allocation2] sm:$0x1]
    %v28 = vld [vmem:[%s1] sm:$0x1]
    %v29 = vld [vmem:[%s2] sm:$0x1]
    %v30 = vmul.f32 %v28, 0.5
    %v31 = vmul.f32 %v30, 1.442695
    %v32 = vpow.pop %v31
    %v33 = vmul.f32 %v29, %v32
    %v34 = vadd.f32 %v27, %v33
    %v35 = vmul.f32 %v34, 1.442695
    %v36 = vpow.pop %v35
    %vm37 = vcmask 253952
    %38 = vst.msk [vmem:[#allocation5] sm:$0x1] %vm37, %v36
    // Predicated region
    $region18: #{tpu_custom_call.1} parent=1 // pred_check
      _
    $region19: #{tpu_custom_call.1} parent=1 // pred_check_branch
      %40 = sbr.rel (0) target = $region21
    $region20: #{tpu_custom_call.1} parent=1 // pred_region
      %s42 = ssub.s32 16, 16
      %43 = vsyncadd [#allocation4], %s42
      %s45 = sshll.u32 [#allocation5], 4
      %s46 = int_to_ptr.vmem [resolvable:$true] %s45
      %48 = dma.vmem_to_hbm [thread:$0]  %s46, 16, %s3, [#allocation4]
    $region21: #{tpu_custom_call.1} parent=1 // pred_fallthru
      _
    // Predicated region
    $region22: #{tpu_custom_call.1} parent=1 // pred_check
      _
    $region23: #{tpu_custom_call.1} parent=1 // pred_check_branch
      %50 = sbr.rel (0) target = $region25
    $region24: #{tpu_custom_call.1} parent=1 // pred_region
      %51 = dma.done [#allocation4], 16
    $region25: #{tpu_custom_call.1} parent=1 // pred_fallthru
      _
    %52 = vsyncpa [#allocation3], 1
    %53 = vsyncpa [#allocation4], 1

</llo_original>
